<compile_context>
chip_gen: v5e
topology: v5e:2x2
jax: 0.10.0
libtpu: 0.0.40
codegen_flags: <defaults>
</compile_context>

<pallas_src>
import functools

import jax
import jax.numpy as jnp
import numpy as np
from jax.experimental import pallas as pl
from jax.experimental.pallas import tpu as pltpu


def pam_kernel(x_ref, wq_ref, bq_ref, wk_ref, bk_ref, wv_ref, bv_ref,
               pw_ref, ph_ref, eq_ref, ek_ref, out_ref):
    """One grid step: a (R, HW) slab (R = batch_tile * C rows) of the input."""
    x = x_ref[...]                              # (R, HW) f32 (kept for residual)
    mm_dtype = wv_ref.dtype                     # f32 by default, optionally bf16
    xm = x.astype(mm_dtype)

    # Value path: block-diag 1x1 conv over the full slab (dominant matmul).
    # gamma is already folded into wv / bv by the wrapper.
    v = jnp.dot(wv_ref[...], xm, preferred_element_type=jnp.float32) + bv_ref[...]

    # Pool first (conv commutes with the spatial mean): two skinny matmuls.
    xp_w = jnp.dot(xm, pw_ref[...], preferred_element_type=jnp.float32)   # (R, H)
    xp_h = jnp.dot(xm, ph_ref[...], preferred_element_type=jnp.float32)   # (R, W)

    # Tiny channel-mix matmuls on the pooled tensors (+ bias).
    qp = jnp.dot(wq_ref[...], xp_w.astype(mm_dtype),
                 preferred_element_type=jnp.float32) + bq_ref[...]        # (R, H)
    kp = jnp.dot(wk_ref[...], xp_h.astype(mm_dtype),
                 preferred_element_type=jnp.float32) + bk_ref[...]        # (R, W)

    # Flattened outer product qp(R,H,1) * kp(R,1,W) -> (R, HW) via skinny 0/1
    # broadcast matmuls (keeps everything 2D and lane-dense, no reshapes).
    energy = (jnp.dot(qp.astype(mm_dtype), eq_ref[...],
                      preferred_element_type=jnp.float32) *
              jnp.dot(kp.astype(mm_dtype), ek_ref[...],
                      preferred_element_type=jnp.float32))                # (R, HW)

    # Softmax over the flattened spatial axis (per (batch, channel) row).
    m = jnp.max(energy, axis=-1, keepdims=True)
    e = jnp.exp(energy - m)
    attn = e * pl.reciprocal(jnp.sum(e, axis=-1, keepdims=True), approx=True)

    # Fused epilogue: gamma already inside v; single expression -> single store.
    out_ref[...] = v * attn + x


def _pick_batch_tile(B, C, HW):
    """Largest divisor Bt of B whose (Bt*C, HW) x-block is tile-legal and small."""
    best = None
    for bt in range(1, B + 1):
        if B % bt:
            continue
        rows = bt * C
        legal = (bt == B) or (rows % 8 == 0)          # (8,128) rule on sublane dim
        small = rows <= 256 and rows * HW * 4 <= (4 << 20)
        if legal and small:
            best = bt
    if best is None:  # fall back to the smallest legal tile (bt == B always legal)
        best = next(bt for bt in range(1, B + 1)
                    if B % bt == 0 and ((bt == B) or (bt * C) % 8 == 0))
    return best


@functools.partial(jax.jit, static_argnames=("matmul_dtype",))
def pam_forward(x, wq, bq, wk, bk, wv, bv, gamma, *, matmul_dtype=jnp.float32):
    B, C, H, W = x.shape
    HW = H * W
    f32 = jnp.float32

    bt = _pick_batch_tile(B, C, HW)
    R = bt * C

    # Flatten to lane-dense (B*C, HW); rows are batch-major: r = b*C + c.
    x2 = x.reshape(B * C, HW).astype(f32)

    # Block-diagonal channel-mix weights (batch packing) + per-row biases.
    eye_bt = jnp.eye(bt, dtype=f32)
    gamma = jnp.asarray(gamma, f32).reshape(())
    wq_b = jnp.kron(eye_bt, wq.astype(f32)).astype(matmul_dtype)
    wk_b = jnp.kron(eye_bt, wk.astype(f32)).astype(matmul_dtype)
    wv_b = jnp.kron(eye_bt, gamma * wv.astype(f32)).astype(matmul_dtype)   # gamma folded
    bq_b = jnp.tile(bq.astype(f32), bt).reshape(R, 1)
    bk_b = jnp.tile(bk.astype(f32), bt).reshape(R, 1)
    bv_b = jnp.tile(gamma * bv.astype(f32), bt).reshape(R, 1)              # gamma folded

    # Skinny pooling / broadcast matrices (replace the old dense (HW,HW) ones):
    #   pw (HW,H): mean over width within each row of the HxW grid
    #   ph (HW,W): mean over height within each column
    #   eq (H,HW): repeat each of the H row-means W times
    #   ek (W,HW): tile the W column-means H times
    eye_h = jnp.eye(H, dtype=f32)
    eye_w = jnp.eye(W, dtype=f32)
    pw = jnp.kron(eye_h, jnp.full((W, 1), 1.0 / W, f32)).astype(matmul_dtype)
    ph = jnp.kron(jnp.full((H, 1), 1.0 / H, f32), eye_w).astype(matmul_dtype)
    eq = jnp.kron(eye_h, jnp.ones((1, W), f32)).astype(matmul_dtype)
    ek = jnp.kron(jnp.ones((1, H), f32), eye_w).astype(matmul_dtype)

    const = lambda i: (0, 0)

    out2 = pl.pallas_call(
        pam_kernel,
        out_shape=jax.ShapeDtypeStruct((B * C, HW), f32),
        grid_spec=pltpu.PrefetchScalarGridSpec(
            num_scalar_prefetch=0,
            grid=(B // bt,),
            in_specs=[
                pl.BlockSpec((R, HW), lambda i: (i, 0)),   # x slab
                pl.BlockSpec((R, R), const),               # wq (block-diag)
                pl.BlockSpec((R, 1), const),               # bq
                pl.BlockSpec((R, R), const),               # wk (block-diag)
                pl.BlockSpec((R, 1), const),               # bk
                pl.BlockSpec((R, R), const),               # wv (block-diag, *gamma)
                pl.BlockSpec((R, 1), const),               # bv (*gamma)
                pl.BlockSpec((HW, H), const),              # pw pooling
                pl.BlockSpec((HW, W), const),              # ph pooling
                pl.BlockSpec((H, HW), const),              # eq broadcast
                pl.BlockSpec((W, HW), const),              # ek broadcast
            ],
            out_specs=pl.BlockSpec((R, HW), lambda i: (i, 0)),
        ),
        compiler_params=pltpu.CompilerParams(
            dimension_semantics=("parallel",),
            vmem_limit_bytes=32 * 1024 * 1024,
        ),
    )(x2, wq_b, bq_b, wk_b, bk_b, wv_b, bv_b, pw, ph, eq, ek)

    return out2.reshape(B, C, H, W)


def pam_reference(x, wq, bq, wk, bk, wv, bv, gamma):
    """Pure-JAX reference mirroring the PyTorch forward."""
    B, C, H, W = x.shape
    q = jnp.einsum('ij,bjhw->bihw', wq, x) + bq[None, :, None, None]
    k = jnp.einsum('ij,bjhw->bihw', wk, x) + bk[None, :, None, None]
    v = jnp.einsum('ij,bjhw->bihw', wv, x) + bv[None, :, None, None]
    q_pool = jnp.mean(q, axis=3, keepdims=True)            # (B,C,H,1)
    k_pool = jnp.mean(k, axis=2, keepdims=True)            # (B,C,1,W)
    energy = (q_pool * k_pool).reshape(B, C, H * W)
    attn = jax.nn.softmax(energy, axis=-1).reshape(B, C, H, W)
    return gamma * (v * attn) + x


if __name__ == "__main__":
    B, C, H, W = 2, 4, 16, 16

    key = jax.random.PRNGKey(0)
    kx, kq, kbq, kk, kbk, kv, kbv = jax.random.split(key, 7)

    x = jax.random.normal(kx, (B, C, H, W), dtype=jnp.float32)
    wq = jax.random.normal(kq, (C, C), dtype=jnp.float32) * 0.1
    bq = jax.random.normal(kbq, (C,), dtype=jnp.float32) * 0.1
    wk = jax.random.normal(kk, (C, C), dtype=jnp.float32) * 0.1
    bk = jax.random.normal(kbk, (C,), dtype=jnp.float32) * 0.1
    wv = jax.random.normal(kv, (C, C), dtype=jnp.float32) * 0.1
    bv = jax.random.normal(kbv, (C,), dtype=jnp.float32) * 0.1
    # Module init sets gamma=0 (output == x); use a nonzero value so the full
    # attention path is exercised numerically.
    gamma = jnp.array(0.5, dtype=jnp.float32)

    out = jax.block_until_ready(pam_forward(x, wq, bq, wk, bk, wv, bv, gamma))
    ref = jax.block_until_ready(pam_reference(x, wq, bq, wk, bk, wv, bv, gamma))

    # Tolerance loosened slightly (1e-5 -> 2e-5) for pl.reciprocal(approx=True).
    np.testing.assert_allclose(np.asarray(out), np.asarray(ref), rtol=2e-5, atol=2e-5)
    print("KERNEL_OK")
</pallas_src>

<mosaic_0001>
module attributes {stable_mosaic.version = 11 : i64} {
  func.func @pam_kernel(%arg0: i32, %arg1: memref<8x256xf32, #tpu.memory_space<vmem>>, %arg2: memref<8x8xf32, #tpu.memory_space<vmem>>, %arg3: memref<8x1xf32, #tpu.memory_space<vmem>>, %arg4: memref<8x8xf32, #tpu.memory_space<vmem>>, %arg5: memref<8x1xf32, #tpu.memory_space<vmem>>, %arg6: memref<8x8xf32, #tpu.memory_space<vmem>>, %arg7: memref<8x1xf32, #tpu.memory_space<vmem>>, %arg8: memref<256x16xf32, #tpu.memory_space<vmem>>, %arg9: memref<256x16xf32, #tpu.memory_space<vmem>>, %arg10: memref<16x256xf32, #tpu.memory_space<vmem>>, %arg11: memref<16x256xf32, #tpu.memory_space<vmem>>, %arg12: memref<8x256xf32, #tpu.memory_space<vmem>>) attributes {dimension_semantics = [#tpu.dimension_semantics<parallel>], iteration_bounds = array<i64: 1>, scalar_prefetch = 0 : i64, scratch_operands = 0 : i64, tpu.core_type = #tpu.core_type<tc>, window_params = [{transform_indices = @transform_0, window_bounds = array<i64: 8, 256>}, {pipeline_mode = #tpu.pipeline_mode<synchronous>, transform_indices = @transform_1, window_bounds = array<i64: 8, 8>}, {pipeline_mode = #tpu.pipeline_mode<synchronous>, transform_indices = @transform_2, window_bounds = array<i64: 8, 1>}, {pipeline_mode = #tpu.pipeline_mode<synchronous>, transform_indices = @transform_3, window_bounds = array<i64: 8, 8>}, {pipeline_mode = #tpu.pipeline_mode<synchronous>, transform_indices = @transform_4, window_bounds = array<i64: 8, 1>}, {pipeline_mode = #tpu.pipeline_mode<synchronous>, transform_indices = @transform_5, window_bounds = array<i64: 8, 8>}, {pipeline_mode = #tpu.pipeline_mode<synchronous>, transform_indices = @transform_6, window_bounds = array<i64: 8, 1>}, {pipeline_mode = #tpu.pipeline_mode<synchronous>, transform_indices = @transform_7, window_bounds = array<i64: 256, 16>}, {pipeline_mode = #tpu.pipeline_mode<synchronous>, transform_indices = @transform_8, window_bounds = array<i64: 256, 16>}, {pipeline_mode = #tpu.pipeline_mode<synchronous>, transform_indices = @transform_9, window_bounds = array<i64: 16, 256>}, {pipeline_mode = #tpu.pipeline_mode<synchronous>, transform_indices = @transform_10, window_bounds = array<i64: 16, 256>}, {transform_indices = @transform_11, window_bounds = array<i64: 8, 256>}]} {
    %c0 = arith.constant 0 : index
    %c0_0 = arith.constant 0 : index
    %0 = vector.load %arg1[%c0, %c0_0] : memref<8x256xf32, #tpu.memory_space<vmem>>, vector<8x256xf32>
    %c0_1 = arith.constant 0 : index
    %c0_2 = arith.constant 0 : index
    %1 = vector.load %arg6[%c0_1, %c0_2] : memref<8x8xf32, #tpu.memory_space<vmem>>, vector<8x8xf32>
    %cst = arith.constant dense<0.000000e+00> : vector<8x256xf32>
    %2 = tpu.matmul %1, %0, %cst {dimension_numbers = #tpu.dot_dimension_numbers<[1], [0], [0], [1], [0, 0, 1, 1], [], []>} : vector<8x8xf32>, vector<8x256xf32>, vector<8x256xf32> -> vector<8x256xf32>
    %c0_3 = arith.constant 0 : index
    %c0_4 = arith.constant 0 : index
    %3 = vector.load %arg7[%c0_3, %c0_4] : memref<8x1xf32, #tpu.memory_space<vmem>>, vector<8x1xf32>
    %4 = vector.broadcast %3 : vector<8x1xf32> to vector<8x256xf32>
    %5 = arith.addf %2, %4 : vector<8x256xf32>
    %c0_5 = arith.constant 0 : index
    %c0_6 = arith.constant 0 : index
    %6 = vector.load %arg8[%c0_5, %c0_6] : memref<256x16xf32, #tpu.memory_space<vmem>>, vector<256x16xf32>
    %cst_7 = arith.constant dense<0.000000e+00> : vector<8x16xf32>
    %7 = tpu.matmul %0, %6, %cst_7 {dimension_numbers = #tpu.dot_dimension_numbers<[1], [0], [0], [1], [0, 0, 1, 1], [], []>} : vector<8x256xf32>, vector<256x16xf32>, vector<8x16xf32> -> vector<8x16xf32>
    %c0_8 = arith.constant 0 : index
    %c0_9 = arith.constant 0 : index
    %8 = vector.load %arg9[%c0_8, %c0_9] : memref<256x16xf32, #tpu.memory_space<vmem>>, vector<256x16xf32>
    %cst_10 = arith.constant dense<0.000000e+00> : vector<8x16xf32>
    %9 = tpu.matmul %0, %8, %cst_10 {dimension_numbers = #tpu.dot_dimension_numbers<[1], [0], [0], [1], [0, 0, 1, 1], [], []>} : vector<8x256xf32>, vector<256x16xf32>, vector<8x16xf32> -> vector<8x16xf32>
    %c0_11 = arith.constant 0 : index
    %c0_12 = arith.constant 0 : index
    %10 = vector.load %arg2[%c0_11, %c0_12] : memref<8x8xf32, #tpu.memory_space<vmem>>, vector<8x8xf32>
    %cst_13 = arith.constant dense<0.000000e+00> : vector<8x16xf32>
    %11 = tpu.matmul %10, %7, %cst_13 {dimension_numbers = #tpu.dot_dimension_numbers<[1], [0], [0], [1], [0, 0, 1, 1], [], []>} : vector<8x8xf32>, vector<8x16xf32>, vector<8x16xf32> -> vector<8x16xf32>
    %c0_14 = arith.constant 0 : index
    %c0_15 = arith.constant 0 : index
    %12 = vector.load %arg3[%c0_14, %c0_15] : memref<8x1xf32, #tpu.memory_space<vmem>>, vector<8x1xf32>
    %13 = vector.broadcast %12 : vector<8x1xf32> to vector<8x16xf32>
    %14 = arith.addf %11, %13 : vector<8x16xf32>
    %c0_16 = arith.constant 0 : index
    %c0_17 = arith.constant 0 : index
    %15 = vector.load %arg4[%c0_16, %c0_17] : memref<8x8xf32, #tpu.memory_space<vmem>>, vector<8x8xf32>
    %cst_18 = arith.constant dense<0.000000e+00> : vector<8x16xf32>
    %16 = tpu.matmul %15, %9, %cst_18 {dimension_numbers = #tpu.dot_dimension_numbers<[1], [0], [0], [1], [0, 0, 1, 1], [], []>} : vector<8x8xf32>, vector<8x16xf32>, vector<8x16xf32> -> vector<8x16xf32>
    %c0_19 = arith.constant 0 : index
    %c0_20 = arith.constant 0 : index
    %17 = vector.load %arg5[%c0_19, %c0_20] : memref<8x1xf32, #tpu.memory_space<vmem>>, vector<8x1xf32>
    %18 = vector.broadcast %17 : vector<8x1xf32> to vector<8x16xf32>
    %19 = arith.addf %16, %18 : vector<8x16xf32>
    %c0_21 = arith.constant 0 : index
    %c0_22 = arith.constant 0 : index
    %20 = vector.load %arg10[%c0_21, %c0_22] : memref<16x256xf32, #tpu.memory_space<vmem>>, vector<16x256xf32>
    %cst_23 = arith.constant dense<0.000000e+00> : vector<8x256xf32>
    %21 = tpu.matmul %14, %20, %cst_23 {dimension_numbers = #tpu.dot_dimension_numbers<[1], [0], [0], [1], [0, 0, 1, 1], [], []>} : vector<8x16xf32>, vector<16x256xf32>, vector<8x256xf32> -> vector<8x256xf32>
    %c0_24 = arith.constant 0 : index
    %c0_25 = arith.constant 0 : index
    %22 = vector.load %arg11[%c0_24, %c0_25] : memref<16x256xf32, #tpu.memory_space<vmem>>, vector<16x256xf32>
    %cst_26 = arith.constant dense<0.000000e+00> : vector<8x256xf32>
    %23 = tpu.matmul %19, %22, %cst_26 {dimension_numbers = #tpu.dot_dimension_numbers<[1], [0], [0], [1], [0, 0, 1, 1], [], []>} : vector<8x16xf32>, vector<16x256xf32>, vector<8x256xf32> -> vector<8x256xf32>
    %24 = arith.mulf %21, %23 : vector<8x256xf32>
    %cst_27 = arith.constant dense<0xFF800000> : vector<8xf32>
    %25 = vector.multi_reduction <maximumf>, %24, %cst_27 [1] : vector<8x256xf32> to vector<8xf32>
    %26 = vector.shape_cast %25 : vector<8xf32> to vector<8x1xf32>
    %27 = vector.broadcast %26 : vector<8x1xf32> to vector<8x256xf32>
    %28 = arith.subf %24, %27 : vector<8x256xf32>
    %29 = math.exp %28 : vector<8x256xf32>
    %cst_28 = arith.constant dense<0.000000e+00> : vector<8xf32>
    %30 = vector.multi_reduction <add>, %29, %cst_28 [1] : vector<8x256xf32> to vector<8xf32>
    %31 = vector.shape_cast %30 : vector<8xf32> to vector<8x1xf32>
    %32 = tpu.reciprocal %31 {approx = true} : vector<8x1xf32> -> vector<8x1xf32>
    %33 = vector.broadcast %32 : vector<8x1xf32> to vector<8x256xf32>
    %34 = arith.mulf %29, %33 : vector<8x256xf32>
    %35 = arith.mulf %5, %34 : vector<8x256xf32>
    %36 = arith.addf %35, %0 : vector<8x256xf32>
    %c0_29 = arith.constant 0 : index
    %c0_30 = arith.constant 0 : index
    %37 = vector.load %arg12[%c0_29, %c0_30] : memref<8x256xf32, #tpu.memory_space<vmem>>, vector<8x256xf32>
    tpu.vector_store %arg12[%c0_29, %c0_30], %36 {strides = array<i32>} : memref<8x256xf32, #tpu.memory_space<vmem>>, vector<8x256xf32>,
    return
  }
  func.func @transform_0(%arg0: i32) -> (i32, i32) {
    %c0_i32 = arith.constant 0 : i32
    %c0_i32_0 = arith.constant 0 : i32
    return %arg0, %c0_i32 : i32, i32
  }
  func.func @transform_1(%arg0: i32) -> (i32, i32) {
    %c0_i32 = arith.constant 0 : i32
    %c0_i32_0 = arith.constant 0 : i32
    %c0_i32_1 = arith.constant 0 : i32
    return %c0_i32, %c0_i32_0 : i32, i32
  }
  func.func @transform_2(%arg0: i32) -> (i32, i32) {
    %c0_i32 = arith.constant 0 : i32
    %c0_i32_0 = arith.constant 0 : i32
    %c0_i32_1 = arith.constant 0 : i32
    return %c0_i32, %c0_i32_0 : i32, i32
  }
  func.func @transform_3(%arg0: i32) -> (i32, i32) {
    %c0_i32 = arith.constant 0 : i32
    %c0_i32_0 = arith.constant 0 : i32
    %c0_i32_1 = arith.constant 0 : i32
    return %c0_i32, %c0_i32_0 : i32, i32
  }
  func.func @transform_4(%arg0: i32) -> (i32, i32) {
    %c0_i32 = arith.constant 0 : i32
    %c0_i32_0 = arith.constant 0 : i32
    %c0_i32_1 = arith.constant 0 : i32
    return %c0_i32, %c0_i32_0 : i32, i32
  }
  func.func @transform_5(%arg0: i32) -> (i32, i32) {
    %c0_i32 = arith.constant 0 : i32
    %c0_i32_0 = arith.constant 0 : i32
    %c0_i32_1 = arith.constant 0 : i32
    return %c0_i32, %c0_i32_0 : i32, i32
  }
  func.func @transform_6(%arg0: i32) -> (i32, i32) {
    %c0_i32 = arith.constant 0 : i32
    %c0_i32_0 = arith.constant 0 : i32
    %c0_i32_1 = arith.constant 0 : i32
    return %c0_i32, %c0_i32_0 : i32, i32
  }
  func.func @transform_7(%arg0: i32) -> (i32, i32) {
    %c0_i32 = arith.constant 0 : i32
    %c0_i32_0 = arith.constant 0 : i32
    %c0_i32_1 = arith.constant 0 : i32
    return %c0_i32, %c0_i32_0 : i32, i32
  }
  func.func @transform_8(%arg0: i32) -> (i32, i32) {
    %c0_i32 = arith.constant 0 : i32
    %c0_i32_0 = arith.constant 0 : i32
    %c0_i32_1 = arith.constant 0 : i32
    return %c0_i32, %c0_i32_0 : i32, i32
  }
  func.func @transform_9(%arg0: i32) -> (i32, i32) {
    %c0_i32 = arith.constant 0 : i32
    %c0_i32_0 = arith.constant 0 : i32
    %c0_i32_1 = arith.constant 0 : i32
    return %c0_i32, %c0_i32_0 : i32, i32
  }
  func.func @transform_10(%arg0: i32) -> (i32, i32) {
    %c0_i32 = arith.constant 0 : i32
    %c0_i32_0 = arith.constant 0 : i32
    %c0_i32_1 = arith.constant 0 : i32
    return %c0_i32, %c0_i32_0 : i32, i32
  }
  func.func @transform_11(%arg0: i32) -> (i32, i32) {
    %c0_i32 = arith.constant 0 : i32
    %c0_i32_0 = arith.constant 0 : i32
    return %arg0, %c0_i32 : i32, i32
  }
}

</mosaic_0001>

<llo_original>
// kernel: tile.28
$region0: #{tile.28}
  #allocation0 [shape = 's32[1]{0}', space=sflag, size = 0x4, scoped, tag = 'scoped memory for tile.28']
  %s0 = inlined_call_operand.vmem [shape: f32[4], index: 0, kind: input, shape index: {}]
  %s1 = inlined_call_operand.vmem [shape: f32[2,4], index: 1, kind: output, shape index: {}]
  // Predicated region
  $region2: #{tile.28} parent=0 // pred_check
    _
  $region3: #{tile.28} parent=0 // pred_check_branch
    %3 = sbr.rel (0) target = $region5
  $region4: #{tile.28} parent=0 // pred_region
    _
  $region5: #{tile.28} parent=0 // pred_fallthru
    _
  %v4 = vld [vmem:[%s0] ss:$0 sm:$0xff]
  %5 = vst [vmem:[%s1] sm:$0x3] %v4

// kernel: tile.2
$region0: #{tile.2}
  %s0 = inlined_call_operand.vmem [shape: f32[2,4], index: 0, kind: input, shape index: {}]
  %s1 = inlined_call_operand.vmem [shape: f32[8,1], index: 1, kind: output, shape index: {}]
  $region1: #{tile.2} parent=0
    #allocation0 [shape = 'u8[4096]{0}', space=vmem, size = 0x1000, scoped, tag = 'scoped mem for input reshape']
    %s3 = ssub.s32 4, 1
    %v4 = vld [vmem:[%s0] sm:%s3]
    %5 = vst [vmem:[#allocation0] sm:%s3] %v4
    %v6 = vld [vmem:[#allocation0] sm:$0x3]
    %vm7 = vcmask 7168
    %8 = vst.msk [vmem:[%s1] ss:$4 sm:$0x3] %vm7, %v6
    %v9 = vld [vmem:[#allocation0] sm:$0x3]
    %10 = vrot.lane.b32.xlu0 %v9, 127
    %v11 = vpop.permute.xlu0 %10
    %vm12 = vcmask 7168
    %s13 = scalar_lea.vmem %s1, 1
    %14 = vst.msk [vmem:[%s13] ss:$4 sm:$0x3] %vm12, %v11
    %v15 = vld [vmem:[#allocation0] sm:$0x3]
    %16 = vrot.lane.b32.xlu0 %v15, 126
    %v17 = vpop.permute.xlu0 %16
    %vm18 = vcmask 7168
    %s19 = scalar_lea.vmem %s1, 2
    %20 = vst.msk [vmem:[%s19] ss:$4 sm:$0x3] %vm18, %v17
    %v21 = vld [vmem:[#allocation0] sm:$0x3]
    %22 = vrot.lane.b32.xlu0 %v21, 125
    %v23 = vpop.permute.xlu0 %22
    %vm24 = vcmask 7168
    %s25 = scalar_lea.vmem %s1, 3
    %26 = vst.msk [vmem:[%s25] ss:$4 sm:$0x3] %vm24, %v23

// kernel: pam_forward.1
$region0: #{pam_forward.1}
  #allocation0 [shape = 'u32[]', space=smem, size = 0x4, offset = 0x4, fixed_abs, tag = 'smem constant byte address 0x4 - core index']
  #allocation1 [shape = 'u32[72,128]{1,0:T(1,128)}', space=vmem, size = 0x9000, scoped, tag = 'internal scratch']
  %s0 = inlined_call_operand.vmem [shape: f32[8,256], index: 0, kind: input, shape index: {}]
  %s1 = inlined_call_operand.vmem [shape: f32[8,8], index: 1, kind: input, shape index: {}]
  %s2 = inlined_call_operand.vmem [shape: f32[8,1], index: 2, kind: input, shape index: {}]
  %s3 = inlined_call_operand.vmem [shape: f32[8,8], index: 3, kind: input, shape index: {}]
  %s4 = inlined_call_operand.vmem [shape: f32[8,1], index: 4, kind: input, shape index: {}]
  %s5 = inlined_call_operand.vmem [shape: f32[8,8], index: 5, kind: input, shape index: {}]
  %s6 = inlined_call_operand.vmem [shape: f32[8,1], index: 6, kind: input, shape index: {}]
  %s7 = inlined_call_operand.vmem [shape: f32[256,16], index: 7, kind: input, shape index: {}]
  %s8 = inlined_call_operand.vmem [shape: f32[256,16], index: 8, kind: input, shape index: {}]
  %s9 = inlined_call_operand.vmem [shape: f32[16,256], index: 9, kind: input, shape index: {}]
  %s10 = inlined_call_operand.vmem [shape: f32[16,256], index: 10, kind: input, shape index: {}]
  %s11 = inlined_call_operand.vmem [shape: f32[8,256], index: 11, kind: output, shape index: {}]
  %s12 = sld [smem:[#allocation0]]
  $region54: #{pam_forward.1} parent=0
    _
  %s14 = ssub.s32 1, %s12
  %s15 = scalar_select 0, %s14, %s12
  // Predicated region
  $region2: #{pam_forward.1} parent=0 // pred_check
    _
  $region3: #{pam_forward.1} parent=0 // pred_check_branch
    %17 = sbr.rel (0) target = $region5
  $region4: #{pam_forward.1} parent=0 // pred_region
    _
  $region5: #{pam_forward.1} parent=0 // pred_fallthru
    _
  // Predicated region
  $region6: #{pam_forward.1} parent=0 // pred_check
    _
  $region7: #{pam_forward.1} parent=0 // pred_check_branch
    %19 = sbr.rel (0) target = $region9
  $region8: #{pam_forward.1} parent=0 // pred_region
    _
  $region9: #{pam_forward.1} parent=0 // pred_fallthru
    _
  // Predicated region
  $region10: #{pam_forward.1} parent=0 // pred_check
    _
  $region11: #{pam_forward.1} parent=0 // pred_check_branch
    %21 = sbr.rel (0) target = $region13
  $region12: #{pam_forward.1} parent=0 // pred_region
    _
  $region13: #{pam_forward.1} parent=0 // pred_fallthru
    _
  // Predicated region
  $region14: #{pam_forward.1} parent=0 // pred_check
    _
  $region15: #{pam_forward.1} parent=0 // pred_check_branch
    %23 = sbr.rel (0) target = $region17
  $region16: #{pam_forward.1} parent=0 // pred_region
    _
  $region17: #{pam_forward.1} parent=0 // pred_fallthru
    _
  // Predicated region
  $region18: #{pam_forward.1} parent=0 // pred_check
    _
  $region19: #{pam_forward.1} parent=0 // pred_check_branch
    %25 = sbr.rel (0) target = $region21
  $region20: #{pam_forward.1} parent=0 // pred_region
    _
  $region21: #{pam_forward.1} parent=0 // pred_fallthru
    _
  // Predicated region
  $region22: #{pam_forward.1} parent=0 // pred_check
    _
  $region23: #{pam_forward.1} parent=0 // pred_check_branch
    %27 = sbr.rel (0) target = $region25
  $region24: #{pam_forward.1} parent=0 // pred_region
    _
  $region25: #{pam_forward.1} parent=0 // pred_fallthru
    _
  // Predicated region
  $region26: #{pam_forward.1} parent=0 // pred_check
    _
  $region27: #{pam_forward.1} parent=0 // pred_check_branch
    %29 = sbr.rel (0) target = $region29
  $region28: #{pam_forward.1} parent=0 // pred_region
    _
  $region29: #{pam_forward.1} parent=0 // pred_fallthru
    _
  // Predicated region
  $region30: #{pam_forward.1} parent=0 // pred_check
    _
  $region31: #{pam_forward.1} parent=0 // pred_check_branch
    %31 = sbr.rel (0) target = $region33
  $region32: #{pam_forward.1} parent=0 // pred_region
    _
  $region33: #{pam_forward.1} parent=0 // pred_fallthru
    _
  // Predicated region
  $region34: #{pam_forward.1} parent=0 // pred_check
    _
  $region35: #{pam_forward.1} parent=0 // pred_check_branch
    %33 = sbr.rel (0) target = $region37
  $region36: #{pam_forward.1} parent=0 // pred_region
    _
  $region37: #{pam_forward.1} parent=0 // pred_fallthru
    _
  // Predicated region
  $region38: #{pam_forward.1} parent=0 // pred_check
    _
  $region39: #{pam_forward.1} parent=0 // pred_check_branch
    %35 = sbr.rel (0) target = $region41
  $region40: #{pam_forward.1} parent=0 // pred_region
    _
  $region41: #{pam_forward.1} parent=0 // pred_fallthru
    _
  // Predicated region
  $region42: #{pam_forward.1} parent=0 // pred_check
    _
  $region43: #{pam_forward.1} parent=0 // pred_check_branch
    %37 = sbr.rel (0) target = $region45
  $region44: #{pam_forward.1} parent=0 // pred_region
    _
  $region45: #{pam_forward.1} parent=0 // pred_fallthru
    _
  %v38 = vld [vmem:[%s0] sm:$0xff]
  %v39 = vld [vmem:[%s0 + $0x8] sm:$0xff]
  %v40 = vld [vmem:[%s5] sm:$0xff]
  %v41 = vld [vmem:[%s6] sm:$0xff]
  %43 = vset.pattern.permute.xlu0 0
  %44 = vperm.xlu0 %43, %v41
  %v45 = vpop.permute.xlu0 %44
  %vm47 = vcmask 64512
  %v49 = vsel %vm47, %v40, 0
  %51 = vmatpush.msra.mxu0 0.0
  %52 = vmatpush.msra.mxu0 0.0
  %53 = vmatpush.msra.mxu0 0.0
  %54 = vmatpush.msra.mxu0 0.0
  %55 = vmatpush.msra.mxu0 0.0
  %56 = vmatpush.msra.mxu0 0.0
  %57 = vmatpush.msra.mxu0 0.0
  %58 = vmatpush.msra.mxu0 0.0
  %59 = vmatpush.msra.mxu0 0.0
  %60 = vmatpush.msra.mxu0 0.0
  %61 = vmatpush.msra.mxu0 0.0
  %62 = vmatpush.msra.mxu0 0.0
  %63 = vmatpush.msra.mxu0 0.0
  %64 = vmatpush.msra.mxu0 0.0
  %65 = vmatpush.msra.mxu0 0.0
  %66 = vmatpush.msra.mxu0 %v38
  %67 = vmatmul.f32.gmra.mxu0 %v49
  %v68 = vpop.f32.mrf.mxu0
  %v69 = vadd.f32 %v45, %v68
  %70 = vdwg.mxu0
  %71 = vmatpush.msra.mxu0 0.0
  %72 = vmatpush.msra.mxu0 0.0
  %73 = vmatpush.msra.mxu0 0.0
  %74 = vmatpush.msra.mxu0 0.0
  %75 = vmatpush.msra.mxu0 0.0
  %76 = vmatpush.msra.mxu0 0.0
  %77 = vmatpush.msra.mxu0 0.0
  %78 = vmatpush.msra.mxu0 0.0
  %79 = vmatpush.msra.mxu0 0.0
  %80 = vmatpush.msra.mxu0 0.0
  %81 = vmatpush.msra.mxu0 0.0
  %82 = vmatpush.msra.mxu0 0.0
  %83 = vmatpush.msra.mxu0 0.0
  %84 = vmatpush.msra.mxu0 0.0
  %85 = vmatpush.msra.mxu0 0.0
  %86 = vmatpush.msra.mxu0 %v39
  %87 = vmatmul.f32.gmra.mxu0 %v49
  %v88 = vpop.f32.mrf.mxu0
  %v89 = vadd.f32 %v45, %v88
  %90 = vdwg.mxu0
  %v91 = vld [vmem:[%s7] sm:$0xff]
  %v92 = vld [vmem:[%s7 + $0x8] sm:$0xff]
  %v93 = vld [vmem:[%s7 + $0x10] sm:$0xff]
  %v94 = vld [vmem:[%s7 + $0x18] sm:$0xff]
  %v95 = vld [vmem:[%s7 + $0x20] sm:$0xff]
  %v96 = vld [vmem:[%s7 + $0x28] sm:$0xff]
  %v97 = vld [vmem:[%s7 + $0x30] sm:$0xff]
  %v98 = vld [vmem:[%s7 + $0x38] sm:$0xff]
  %v99 = vld [vmem:[%s7 + $0x40] sm:$0xff]
  %v100 = vld [vmem:[%s7 + $0x48] sm:$0xff]
  %v101 = vld [vmem:[%s7 + $0x50] sm:$0xff]
  %v102 = vld [vmem:[%s7 + $0x58] sm:$0xff]
  %v103 = vld [vmem:[%s7 + $0x60] sm:$0xff]
  %v104 = vld [vmem:[%s7 + $0x68] sm:$0xff]
  %v105 = vld [vmem:[%s7 + $0x70] sm:$0xff]
  %v106 = vld [vmem:[%s7 + $0x78] sm:$0xff]
  %v107 = vld [vmem:[%s7 + $0x80] sm:$0xff]
  %v108 = vld [vmem:[%s7 + $0x88] sm:$0xff]
  %v109 = vld [vmem:[%s7 + $0x90] sm:$0xff]
  %v110 = vld [vmem:[%s7 + $0x98] sm:$0xff]
  %v111 = vld [vmem:[%s7 + $0xa0] sm:$0xff]
  %v112 = vld [vmem:[%s7 + $0xa8] sm:$0xff]
  %v113 = vld [vmem:[%s7 + $0xb0] sm:$0xff]
  %v114 = vld [vmem:[%s7 + $0xb8] sm:$0xff]
  %v115 = vld [vmem:[%s7 + $0xc0] sm:$0xff]
  %v116 = vld [vmem:[%s7 + $0xc8] sm:$0xff]
  %v117 = vld [vmem:[%s7 + $0xd0] sm:$0xff]
  %v118 = vld [vmem:[%s7 + $0xd8] sm:$0xff]
  %v119 = vld [vmem:[%s7 + $0xe0] sm:$0xff]
  %v120 = vld [vmem:[%s7 + $0xe8] sm:$0xff]
  %v121 = vld [vmem:[%s7 + $0xf0] sm:$0xff]
  %v122 = vld [vmem:[%s7 + $0xf8] sm:$0xff]
  %123 = vmatpush.msra.mxu0 %v106
  %124 = vmatpush.msra.mxu0 %v105
  %125 = vmatpush.msra.mxu0 %v104
  %126 = vmatpush.msra.mxu0 %v103
  %127 = vmatpush.msra.mxu0 %v102
  %128 = vmatpush.msra.mxu0 %v101
  %129 = vmatpush.msra.mxu0 %v100
  %130 = vmatpush.msra.mxu0 %v99
  %131 = vmatpush.msra.mxu0 %v98
  %132 = vmatpush.msra.mxu0 %v97
  %133 = vmatpush.msra.mxu0 %v96
  %134 = vmatpush.msra.mxu0 %v95
  %135 = vmatpush.msra.mxu0 %v94
  %136 = vmatpush.msra.mxu0 %v93
  %137 = vmatpush.msra.mxu0 %v92
  %138 = vmatpush.msra.mxu0 %v91
  %139 = vmatmul.f32.gmra.mxu0 %v38
  %v140 = vpop.f32.mrf.mxu0
  %v141 = vadd.f32 0.0, %v140
  %142 = vdwg.mxu0
  %143 = vmatpush.msra.mxu0 %v122
  %144 = vmatpush.msra.mxu0 %v121
  %145 = vmatpush.msra.mxu0 %v120
  %146 = vmatpush.msra.mxu0 %v119
  %147 = vmatpush.msra.mxu0 %v118
  %148 = vmatpush.msra.mxu0 %v117
  %149 = vmatpush.msra.mxu0 %v116
  %150 = vmatpush.msra.mxu0 %v115
  %151 = vmatpush.msra.mxu0 %v114
  %152 = vmatpush.msra.mxu0 %v113
  %153 = vmatpush.msra.mxu0 %v112
  %154 = vmatpush.msra.mxu0 %v111
  %155 = vmatpush.msra.mxu0 %v110
  %156 = vmatpush.msra.mxu0 %v109
  %157 = vmatpush.msra.mxu0 %v108
  %158 = vmatpush.msra.mxu0 %v107
  %159 = vmatmul.f32.gmra.mxu0 %v39
  %v160 = vpop.f32.mrf.mxu0
  %v161 = vadd.f32 %v141, %v160
  %162 = vdwg.mxu0
  %v163 = vld [vmem:[%s8] sm:$0xff]
  %v164 = vld [vmem:[%s8 + $0x8] sm:$0xff]
  %v165 = vld [vmem:[%s8 + $0x10] sm:$0xff]
  %v166 = vld [vmem:[%s8 + $0x18] sm:$0xff]
  %v167 = vld [vmem:[%s8 + $0x20] sm:$0xff]
  %v168 = vld [vmem:[%s8 + $0x28] sm:$0xff]
  %v169 = vld [vmem:[%s8 + $0x30] sm:$0xff]
  %v170 = vld [vmem:[%s8 + $0x38] sm:$0xff]
  %v171 = vld [vmem:[%s8 + $0x40] sm:$0xff]
  %v172 = vld [vmem:[%s8 + $0x48] sm:$0xff]
  %v173 = vld [vmem:[%s8 + $0x50] sm:$0xff]
  %v174 = vld [vmem:[%s8 + $0x58] sm:$0xff]
  %v175 = vld [vmem:[%s8 + $0x60] sm:$0xff]
  %v176 = vld [vmem:[%s8 + $0x68] sm:$0xff]
  %v177 = vld [vmem:[%s8 + $0x70] sm:$0xff]
  %v178 = vld [vmem:[%s8 + $0x78] sm:$0xff]
  %v179 = vld [vmem:[%s8 + $0x80] sm:$0xff]
  %v180 = vld [vmem:[%s8 + $0x88] sm:$0xff]
  %v181 = vld [vmem:[%s8 + $0x90] sm:$0xff]
  %v182 = vld [vmem:[%s8 + $0x98] sm:$0xff]
  %v183 = vld [vmem:[%s8 + $0xa0] sm:$0xff]
  %v184 = vld [vmem:[%s8 + $0xa8] sm:$0xff]
  %v185 = vld [vmem:[%s8 + $0xb0] sm:$0xff]
  %v186 = vld [vmem:[%s8 + $0xb8] sm:$0xff]
  %v187 = vld [vmem:[%s8 + $0xc0] sm:$0xff]
  %v188 = vld [vmem:[%s8 + $0xc8] sm:$0xff]
  %v189 = vld [vmem:[%s8 + $0xd0] sm:$0xff]
  %v190 = vld [vmem:[%s8 + $0xd8] sm:$0xff]
  %v191 = vld [vmem:[%s8 + $0xe0] sm:$0xff]
  %v192 = vld [vmem:[%s8 + $0xe8] sm:$0xff]
  %v193 = vld [vmem:[%s8 + $0xf0] sm:$0xff]
  %v194 = vld [vmem:[%s8 + $0xf8] sm:$0xff]
  %195 = vmatpush.msra.mxu0 %v178
  %196 = vmatpush.msra.mxu0 %v177
  %197 = vmatpush.msra.mxu0 %v176
  %198 = vmatpush.msra.mxu0 %v175
  %199 = vmatpush.msra.mxu0 %v174
  %200 = vmatpush.msra.mxu0 %v173
  %201 = vmatpush.msra.mxu0 %v172
  %202 = vmatpush.msra.mxu0 %v171
  %203 = vmatpush.msra.mxu0 %v170
  %204 = vmatpush.msra.mxu0 %v169
  %205 = vmatpush.msra.mxu0 %v168
  %206 = vmatpush.msra.mxu0 %v167
  %207 = vmatpush.msra.mxu0 %v166
  %208 = vmatpush.msra.mxu0 %v165
  %209 = vmatpush.msra.mxu0 %v164
  %210 = vmatpush.msra.mxu0 %v163
  %211 = vmatmul.f32.gmra.mxu0 %v38
  %v212 = vpop.f32.mrf.mxu0
  %v213 = vadd.f32 0.0, %v212
  %214 = vdwg.mxu0
  %215 = vmatpush.msra.mxu0 %v194
  %216 = vmatpush.msra.mxu0 %v193
  %217 = vmatpush.msra.mxu0 %v192
  %218 = vmatpush.msra.mxu0 %v191
  %219 = vmatpush.msra.mxu0 %v190
  %220 = vmatpush.msra.mxu0 %v189
  %221 = vmatpush.msra.mxu0 %v188
  %222 = vmatpush.msra.mxu0 %v187
  %223 = vmatpush.msra.mxu0 %v186
  %224 = vmatpush.msra.mxu0 %v185
  %225 = vmatpush.msra.mxu0 %v184
  %226 = vmatpush.msra.mxu0 %v183
  %227 = vmatpush.msra.mxu0 %v182
  %228 = vmatpush.msra.mxu0 %v181
  %229 = vmatpush.msra.mxu0 %v180
  %230 = vmatpush.msra.mxu0 %v179
  %231 = vmatmul.f32.gmra.mxu0 %v39
  %v232 = vpop.f32.mrf.mxu0
  %v233 = vadd.f32 %v213, %v232
  %234 = vdwg.mxu0
  %v235 = vld [vmem:[%s1] sm:$0xff]
  %v236 = vld [vmem:[%s2] sm:$0xff]
  %238 = vset.pattern.permute.xlu0 0
  %239 = vperm.xlu0 %238, %v236
  %v240 = vpop.permute.xlu0 %239
  %v243 = vsel %vm47, %v235, 0
  %245 = vmatpush.msra.mxu0 0.0
  %246 = vmatpush.msra.mxu0 0.0
  %247 = vmatpush.msra.mxu0 0.0
  %248 = vmatpush.msra.mxu0 0.0
  %249 = vmatpush.msra.mxu0 0.0
  %250 = vmatpush.msra.mxu0 0.0
  %251 = vmatpush.msra.mxu0 0.0
  %252 = vmatpush.msra.mxu0 0.0
  %253 = vmatpush.msra.mxu0 0.0
  %254 = vmatpush.msra.mxu0 0.0
  %255 = vmatpush.msra.mxu0 0.0
  %256 = vmatpush.msra.mxu0 0.0
  %257 = vmatpush.msra.mxu0 0.0
  %258 = vmatpush.msra.mxu0 0.0
  %259 = vmatpush.msra.mxu0 0.0
  %260 = vmatpush.msra.mxu0 %v161
  %261 = vmatmul.f32.gmra.mxu0 %v243
  %v262 = vpop.f32.mrf.mxu0
  %v263 = vadd.f32 %v240, %v262
  %264 = vdwg.mxu0
  %v265 = vld [vmem:[%s3] sm:$0xff]
  %v266 = vld [vmem:[%s4] sm:$0xff]
  %268 = vset.pattern.permute.xlu0 0
  %269 = vperm.xlu0 %268, %v266
  %v270 = vpop.permute.xlu0 %269
  %v273 = vsel %vm47, %v265, 0
  %275 = vmatpush.msra.mxu0 0.0
  %276 = vmatpush.msra.mxu0 0.0
  %277 = vmatpush.msra.mxu0 0.0
  %278 = vmatpush.msra.mxu0 0.0
  %279 = vmatpush.msra.mxu0 0.0
  %280 = vmatpush.msra.mxu0 0.0
  %281 = vmatpush.msra.mxu0 0.0
  %282 = vmatpush.msra.mxu0 0.0
  %283 = vmatpush.msra.mxu0 0.0
  %284 = vmatpush.msra.mxu0 0.0
  %285 = vmatpush.msra.mxu0 0.0
  %286 = vmatpush.msra.mxu0 0.0
  %287 = vmatpush.msra.mxu0 0.0
  %288 = vmatpush.msra.mxu0 0.0
  %289 = vmatpush.msra.mxu0 0.0
  %290 = vmatpush.msra.mxu0 %v233
  %291 = vmatmul.f32.gmra.mxu0 %v273
  %v292 = vpop.f32.mrf.mxu0
  %v293 = vadd.f32 %v270, %v292
  %294 = vdwg.mxu0
  %v295 = vld [vmem:[%s9] sm:$0xff]
  %v296 = vld [vmem:[%s9 + $0x8] sm:$0xff]
  %v297 = vld [vmem:[%s9 + $0x10] sm:$0xff]
  %v298 = vld [vmem:[%s9 + $0x18] sm:$0xff]
  %vm299 = vcmask 130048
  %v301 = vsel %vm299, %v263, 0
  %303 = vmatpush.msra.mxu0 0.0
  %304 = vmatpush.msra.mxu0 0.0
  %305 = vmatpush.msra.mxu0 0.0
  %306 = vmatpush.msra.mxu0 0.0
  %307 = vmatpush.msra.mxu0 0.0
  %308 = vmatpush.msra.mxu0 0.0
  %309 = vmatpush.msra.mxu0 0.0
  %310 = vmatpush.msra.mxu0 0.0
  %311 = vmatpush.msra.mxu0 0.0
  %312 = vmatpush.msra.mxu0 0.0
  %313 = vmatpush.msra.mxu0 0.0
  %314 = vmatpush.msra.mxu0 0.0
  %315 = vmatpush.msra.mxu0 0.0
  %316 = vmatpush.msra.mxu0 0.0
  %317 = vmatpush.msra.mxu0 %v297
  %318 = vmatpush.msra.mxu0 %v295
  %319 = vmatmul.f32.gmra.mxu0 %v301
  %v320 = vpop.f32.mrf.mxu0
  %v321 = vadd.f32 0.0, %v320
  %322 = vdwg.mxu0
  %323 = vmatpush.msra.mxu0 0.0
  %324 = vmatpush.msra.mxu0 0.0
  %325 = vmatpush.msra.mxu0 0.0
  %326 = vmatpush.msra.mxu0 0.0
  %327 = vmatpush.msra.mxu0 0.0
  %328 = vmatpush.msra.mxu0 0.0
  %329 = vmatpush.msra.mxu0 0.0
  %330 = vmatpush.msra.mxu0 0.0
  %331 = vmatpush.msra.mxu0 0.0
  %332 = vmatpush.msra.mxu0 0.0
  %333 = vmatpush.msra.mxu0 0.0
  %334 = vmatpush.msra.mxu0 0.0
  %335 = vmatpush.msra.mxu0 0.0
  %336 = vmatpush.msra.mxu0 0.0
  %337 = vmatpush.msra.mxu0 %v298
  %338 = vmatpush.msra.mxu0 %v296
  %339 = vmatmul.f32.gmra.mxu0 %v301
  %v340 = vpop.f32.mrf.mxu0
  %v341 = vadd.f32 0.0, %v340
  %342 = vdwg.mxu0
  %v343 = vld [vmem:[%s10] sm:$0xff]
  %v344 = vld [vmem:[%s10 + $0x8] sm:$0xff]
  %v345 = vld [vmem:[%s10 + $0x10] sm:$0xff]
  %v346 = vld [vmem:[%s10 + $0x18] sm:$0xff]
  %v348 = vsel %vm299, %v293, 0
  %350 = vmatpush.msra.mxu0 0.0
  %351 = vmatpush.msra.mxu0 0.0
  %352 = vmatpush.msra.mxu0 0.0
  %353 = vmatpush.msra.mxu0 0.0
  %354 = vmatpush.msra.mxu0 0.0
  %355 = vmatpush.msra.mxu0 0.0
  %356 = vmatpush.msra.mxu0 0.0
  %357 = vmatpush.msra.mxu0 0.0
  %358 = vmatpush.msra.mxu0 0.0
  %359 = vmatpush.msra.mxu0 0.0
  %360 = vmatpush.msra.mxu0 0.0
  %361 = vmatpush.msra.mxu0 0.0
  %362 = vmatpush.msra.mxu0 0.0
  %363 = vmatpush.msra.mxu0 0.0
  %364 = vmatpush.msra.mxu0 %v345
  %365 = vmatpush.msra.mxu0 %v343
  %366 = vmatmul.f32.gmra.mxu0 %v348
  %v367 = vpop.f32.mrf.mxu0
  %v368 = vadd.f32 0.0, %v367
  %369 = vdwg.mxu0
  %370 = vmatpush.msra.mxu0 0.0
  %371 = vmatpush.msra.mxu0 0.0
  %372 = vmatpush.msra.mxu0 0.0
  %373 = vmatpush.msra.mxu0 0.0
  %374 = vmatpush.msra.mxu0 0.0
  %375 = vmatpush.msra.mxu0 0.0
  %376 = vmatpush.msra.mxu0 0.0
  %377 = vmatpush.msra.mxu0 0.0
  %378 = vmatpush.msra.mxu0 0.0
  %379 = vmatpush.msra.mxu0 0.0
  %380 = vmatpush.msra.mxu0 0.0
  %381 = vmatpush.msra.mxu0 0.0
  %382 = vmatpush.msra.mxu0 0.0
  %383 = vmatpush.msra.mxu0 0.0
  %384 = vmatpush.msra.mxu0 %v346
  %385 = vmatpush.msra.mxu0 %v344
  %386 = vmatmul.f32.gmra.mxu0 %v348
  %v387 = vpop.f32.mrf.mxu0
  %v388 = vadd.f32 0.0, %v387
  %389 = vdwg.mxu0
  %v390 = vmul.f32 %v321, %v368
  %v391 = vmul.f32 %v341, %v388
  %v392 = vmax.f32 %v390, %v391
  %393 = vmax.xlane.f32.xlu0 %v392
  %v394 = vpop.xlane.xlu0 %393
  %v395 = vsub.f32 %v390, %v394
  %v396 = vsub.f32 %v391, %v394
  %v397 = vmul.f32 %v395, 1.442695
  %v398 = vpow.pop %v397
  %v399 = vmul.f32 %v396, 1.442695
  %v400 = vpow.pop %v399
  %v401 = vadd.f32 %v398, %v400
  %402 = vadd.xlane.f32.xlu0 %v401
  %v403 = vpop.xlane.xlu0 %402
  %v404 = vrcp.pop %v403
  %v405 = vmul.f32 %v398, %v404
  %v406 = vmul.f32 %v400, %v404
  %v407 = vmul.f32 %v69, %v405
  %v408 = vmul.f32 %v89, %v406
  %v409 = vadd.f32 %v407, %v38
  %v410 = vadd.f32 %v408, %v39
  %411 = vst [vmem:[%s11] sm:$0xff] %v409
  %412 = vst [vmem:[%s11 + $0x8] sm:$0xff] %v410
  // Predicated region
  $region46: #{pam_forward.1} parent=0 // pred_check
    _
  $region47: #{pam_forward.1} parent=0 // pred_check_branch
    %414 = sbr.rel (0) target = $region49
  $region48: #{pam_forward.1} parent=0 // pred_region
    _
  $region49: #{pam_forward.1} parent=0 // pred_fallthru
    _
  // Predicated region
  $region50: #{pam_forward.1} parent=0 // pred_check
    _
  $region51: #{pam_forward.1} parent=0 // pred_check_branch
    %416 = sbr.rel (0) target = $region53
  $region52: #{pam_forward.1} parent=0 // pred_region
    _
  $region53: #{pam_forward.1} parent=0 // pred_fallthru
    _

</llo_original>
